<compile_context>
chip_gen: v6e
topology: v6e:2x2x1
jax: 0.10.0
libtpu: 0.0.40
codegen_flags: <defaults>
</compile_context>

<pallas_src>
import jax
import jax.numpy as jnp
from jax import lax
from jax.experimental import pallas as pl
from jax.experimental.pallas import tpu as pltpu


def _round_up(x: int, m: int) -> int:
    return ((x + m - 1) // m) * m


def _split_dim(total: int, max_tile: int, align: int):
    """`total` is a multiple of `align`. Return the largest `align`-multiple tile
    <= max_tile that divides `total` exactly (zero padding), plus the padded total
    (== total). Falls back to `align`, which always divides."""
    if total <= max_tile:
        return total, total
    tile = max((max_tile // align) * align, align)
    while tile > align and total % tile:
        tile -= align
    return tile, total


def _make_kernel(dot_precision):
    def kernel(x_ref, w_ref, b_ref, o_ref):
        # x_ref: (tm, tk)  activation tile (bf16 or f32)
        # w_ref: (tk, tn)  pre-transposed weight tile [D, O] layout
        # b_ref: (1,  tn)  bias row (f32)
        # o_ref: (tm, tn)  f32 output tile, resident across the K axis (accumulator)
        k = pl.program_id(2)

        @pl.when(k == 0)
        def _():
            o_ref[...] = jnp.zeros_like(o_ref)

        # Plain (tm,tk)x(tk,tn) contraction on the MXU; f32 accumulation.
        o_ref[...] += jnp.dot(
            x_ref[...], w_ref[...],
            preferred_element_type=jnp.float32,
            precision=dot_precision,
        )

        @pl.when(k == pl.num_programs(2) - 1)
        def _():
            z = o_ref[...] + b_ref[...]          # [tm, tn] + [1, tn]
            # Numerically-stable sigmoid; exp + reciprocal both run on the EUP.
            e = jnp.exp(-jnp.abs(z))
            o_ref[...] = jnp.where(z >= 0.0, 1.0, e) * pl.reciprocal(1.0 + e, approx=False)

    return kernel


def make_knn_forward(w, b, *, tile_m=512, tile_n=512, tile_k=1024,
                     input_dtype=jnp.bfloat16):
    """Build a jitted forward fn computing sigmoid(x @ w.T + b).

    w: [O, D] f32 (nn.Linear weight layout), b: [O] f32.
    Constant-parameter preparation (transpose/pad/cast) happens once here.
    input_dtype: jnp.bfloat16 (default, fast MXU + half HBM traffic) or jnp.float32
                 (exact; kernel then uses Precision.HIGHEST).
    """
    O, D = w.shape
    assert b.shape == (O,)

    # ---- N (output) and K (contraction) tiling: independent of batch --------
    tn_max = _round_up(tile_n, 128)
    O_pad128 = _round_up(O, 128)
    tn, O_pad = _split_dim(O_pad128, tn_max, 128)

    tk_max = _round_up(tile_k, 128)
    if D <= tk_max:
        tk, D_pad = D, D                         # single K step, block == full dim
    else:
        D_pad128 = _round_up(D, 128)
        tk, D_pad = _split_dim(D_pad128, tk_max, 128)

    # ---- constant params: transpose / pad / cast ONCE -----------------------
    wt = jnp.asarray(w, jnp.float32).T           # [D, O] -> plain MXU contraction
    if D_pad != D or O_pad != O:
        wt = jnp.pad(wt, ((0, D_pad - D), (0, O_pad - O)))
    wt = wt.astype(input_dtype)

    bp = jnp.asarray(b, jnp.float32)
    if O_pad != O:
        bp = jnp.pad(bp, (0, O_pad - O))
    bp = bp.reshape(1, O_pad)                    # bias stays f32

    dot_precision = (lax.Precision.HIGHEST
                     if jnp.dtype(input_dtype) == jnp.dtype(jnp.float32)
                     else lax.Precision.DEFAULT)
    kernel = _make_kernel(dot_precision)
    in_isz = jnp.dtype(input_dtype).itemsize

    def forward(x):
        B, Dx = x.shape
        assert Dx == D

        # ---- M (batch) tiling ------------------------------------------------
        B_pad = _round_up(B, 8)
        tm, _ = _split_dim(B_pad, _round_up(tile_m, 8), 8)

        # v7x has 2 TensorCores: make sure there are >= 2 parallel (i,j) tiles
        # when the batch allows it (O may be too small to split below 128 lanes).
        if (B_pad // tm) * (O_pad // tn) < 2 and B_pad >= 16:
            tm, _ = _split_dim(B_pad, max(8, _round_up(B_pad // 2, 8)), 8)

        grid = (B_pad // tm, O_pad // tn, D_pad // tk)

        # ---- pad / cast only the activation per call --------------------------
        xp = x
        if B_pad != B or D_pad != D:
            xp = jnp.pad(xp, ((0, B_pad - B), (0, D_pad - D)))
        xp = xp.astype(input_dtype)

        # Double-buffered VMEM footprint; keep well under every generation's
        # budget (v7x: 64 MiB physical) but above v5e's 16 MiB scoped default.
        tile_bytes = 2 * (tm * tk * in_isz + tk * tn * in_isz + tn * 4 + tm * tn * 4)
        vmem_limit = int(min(max(2 * tile_bytes, 32 << 20), 48 << 20))

        cost = pl.CostEstimate(
            flops=2 * B_pad * O_pad * D_pad,
            transcendentals=B_pad * O_pad,
            bytes_accessed=(B_pad * D_pad * in_isz + D_pad * O_pad * in_isz
                            + O_pad * 4 + B_pad * O_pad * 4),
        )

        out = pl.pallas_call(
            kernel,
            out_shape=jax.ShapeDtypeStruct((B_pad, O_pad), jnp.float32),
            grid_spec=pltpu.PrefetchScalarGridSpec(
                num_scalar_prefetch=0,
                grid=grid,
                in_specs=[
                    pl.BlockSpec((tm, tk), lambda i, j, k: (i, k)),   # x tile
                    pl.BlockSpec((tk, tn), lambda i, j, k: (k, j)),   # W.T tile
                    pl.BlockSpec((1, tn), lambda i, j, k: (0, j)),    # bias row
                ],
                out_specs=pl.BlockSpec((tm, tn), lambda i, j, k: (i, j)),
            ),
            compiler_params=pltpu.CompilerParams(
                # batch/out tiles independent -> megacore-parallel on v7x;
                # K is the reduction axis (output tile resident across it).
                dimension_semantics=("parallel", "parallel", "arbitrary"),
                vmem_limit_bytes=vmem_limit,
            ),
            cost_estimate=cost,
        )(xp, wt, bp)

        return out[:B, :O]

    return jax.jit(forward)


def _reference(x, w, b):
    z = lax.dot_general(x, w, dimension_numbers=(((1,), (1,)), ((), ())),
                        precision=lax.Precision.HIGHEST) + b
    return jax.nn.sigmoid(z)


if __name__ == "__main__":
    key = jax.random.PRNGKey(0)
    kx, kw, kb, kx2, kw2, kb2 = jax.random.split(key, 6)

    # --- Test A: the module's toy configuration (batch=8, D=32, O=1) ---------
    B, D, O = 8, 32, 1
    x = jax.random.normal(kx, (B, D), dtype=jnp.float32)
    w = jax.random.normal(kw, (O, D), dtype=jnp.float32) * 0.1
    b = jax.random.normal(kb, (O,), dtype=jnp.float32) * 0.1
    y_ref = _reference(x, w, b)

    # exact f32 path (tight tolerance)
    fwd_f32 = make_knn_forward(w, b, input_dtype=jnp.float32)
    y = jax.block_until_ready(fwd_f32(x))
    assert y.shape == (B, O)
    assert jnp.allclose(y, y_ref, atol=2e-5, rtol=2e-5), "mismatch (test A, f32)"

    # default bf16 fast path (f32 accumulate/epilogue; looser tolerance)
    fwd_bf16 = make_knn_forward(w, b)
    y_bf = jax.block_until_ready(fwd_bf16(x))
    assert y_bf.shape == (B, O)
    assert jnp.allclose(y_bf, y_ref, atol=2e-2, rtol=2e-2), "mismatch (test A, bf16)"

    # --- Test B: multi-tile grid (M, N, K all tiled), O padding to 128 --------
    B2, D2, O2 = 24, 384, 5
    x2 = jax.random.normal(kx2, (B2, D2), dtype=jnp.float32)
    w2 = jax.random.normal(kw2, (O2, D2), dtype=jnp.float32) * 0.05
    b2 = jax.random.normal(kb2, (O2,), dtype=jnp.float32) * 0.1
    y2_ref = _reference(x2, w2, b2)

    fwd2 = make_knn_forward(w2, b2, tile_m=8, tile_n=128, tile_k=128,
                            input_dtype=jnp.float32)
    y2 = jax.block_until_ready(fwd2(x2))
    assert y2.shape == (B2, O2)
    assert jnp.allclose(y2, y2_ref, atol=2e-5, rtol=2e-5), "mismatch (test B, f32)"

    fwd2_bf = make_knn_forward(w2, b2, tile_m=8, tile_n=128, tile_k=128)
    y2_bf = jax.block_until_ready(fwd2_bf(x2))
    assert jnp.allclose(y2_bf, y2_ref, atol=2e-2, rtol=2e-2), "mismatch (test B, bf16)"

    print("KERNEL_OK")
</pallas_src>

<mosaic_0001>
module attributes {stable_mosaic.version = 11 : i64} {
  func.func @kernel(%arg0: i32, %arg1: i32, %arg2: i32, %arg3: memref<8x32xf32, #tpu.memory_space<vmem>>, %arg4: memref<32x128xf32, #tpu.memory_space<vmem>>, %arg5: memref<1x128xf32, #tpu.memory_space<vmem>>, %arg6: memref<8x128xf32, #tpu.memory_space<vmem>>) attributes {dimension_semantics = [#tpu.dimension_semantics<parallel>, #tpu.dimension_semantics<parallel>, #tpu.dimension_semantics<arbitrary>], iteration_bounds = array<i64: 1, 1, 1>, scalar_prefetch = 0 : i64, scratch_operands = 0 : i64, tpu.core_type = #tpu.core_type<tc>, window_params = [{transform_indices = @transform_0, window_bounds = array<i64: 8, 32>}, {transform_indices = @transform_1, window_bounds = array<i64: 32, 128>}, {transform_indices = @transform_2, window_bounds = array<i64: 1, 128>}, {transform_indices = @transform_3, window_bounds = array<i64: 8, 128>}]} {
    %c0_i32 = arith.constant 0 : i32
    %0 = arith.cmpi eq, %arg2, %c0_i32 : i32
    %1 = arith.extui %0 : i1 to i32
    %c0_i32_0 = arith.constant 0 : i32
    %2 = arith.cmpi ne, %1, %c0_i32_0 : i32
    scf.if %2 {
      %cst_10 = arith.constant 0.000000e+00 : f32
      %12 = vector.broadcast %cst_10 : f32 to vector<8x128xf32>
      %c0_11 = arith.constant 0 : index
      %c0_12 = arith.constant 0 : index
      %13 = vector.load %arg6[%c0_11, %c0_12] : memref<8x128xf32, #tpu.memory_space<vmem>>, vector<8x128xf32>
      tpu.vector_store %arg6[%c0_11, %c0_12], %12 {strides = array<i32>} : memref<8x128xf32, #tpu.memory_space<vmem>>, vector<8x128xf32>,
    } else {
    }
    %c0 = arith.constant 0 : index
    %c0_1 = arith.constant 0 : index
    %3 = vector.load %arg6[%c0, %c0_1] : memref<8x128xf32, #tpu.memory_space<vmem>>, vector<8x128xf32>
    %c0_2 = arith.constant 0 : index
    %c0_3 = arith.constant 0 : index
    %4 = vector.load %arg3[%c0_2, %c0_3] : memref<8x32xf32, #tpu.memory_space<vmem>>, vector<8x32xf32>
    %c0_4 = arith.constant 0 : index
    %c0_5 = arith.constant 0 : index
    %5 = vector.load %arg4[%c0_4, %c0_5] : memref<32x128xf32, #tpu.memory_space<vmem>>, vector<32x128xf32>
    %cst = arith.constant dense<0.000000e+00> : vector<8x128xf32>
    %6 = tpu.matmul %4, %5, %cst {dimension_numbers = #tpu.dot_dimension_numbers<[1], [0], [0], [1], [0, 0, 1, 1], [], []>, precision = #tpu.contract_precision<fp32>} : vector<8x32xf32>, vector<32x128xf32>, vector<8x128xf32> -> vector<8x128xf32>
    %7 = arith.addf %3, %6 : vector<8x128xf32>
    %c0_6 = arith.constant 0 : index
    %c0_7 = arith.constant 0 : index
    %8 = vector.load %arg6[%c0_6, %c0_7] : memref<8x128xf32, #tpu.memory_space<vmem>>, vector<8x128xf32>
    tpu.vector_store %arg6[%c0_6, %c0_7], %7 {strides = array<i32>} : memref<8x128xf32, #tpu.memory_space<vmem>>, vector<8x128xf32>,
    %c0_i32_8 = arith.constant 0 : i32
    %9 = arith.cmpi eq, %arg2, %c0_i32_8 : i32
    %10 = arith.extui %9 : i1 to i32
    %c0_i32_9 = arith.constant 0 : i32
    %11 = arith.cmpi ne, %10, %c0_i32_9 : i32
    scf.if %11 {
      %c0_10 = arith.constant 0 : index
      %c0_11 = arith.constant 0 : index
      %12 = vector.load %arg6[%c0_10, %c0_11] : memref<8x128xf32, #tpu.memory_space<vmem>>, vector<8x128xf32>
      %c0_12 = arith.constant 0 : index
      %c0_13 = arith.constant 0 : index
      %13 = vector.load %arg5[%c0_12, %c0_13] : memref<1x128xf32, #tpu.memory_space<vmem>>, vector<1x128xf32>
      %14 = vector.broadcast %13 : vector<1x128xf32> to vector<8x128xf32>
      %15 = arith.addf %12, %14 : vector<8x128xf32>
      %16 = math.absf %15 : vector<8x128xf32>
      %cst_14 = arith.constant 0.000000e+00 : f32
      %17 = vector.broadcast %cst_14 : f32 to vector<8x128xf32>
      %18 = arith.subf %17, %16 : vector<8x128xf32>
      %19 = math.exp %18 : vector<8x128xf32>
      %cst_15 = arith.constant 0.000000e+00 : f32
      %20 = vector.broadcast %cst_15 : f32 to vector<8x128xf32>
      %21 = arith.cmpf oge, %15, %20 : vector<8x128xf32>
      %cst_16 = arith.constant 1.000000e+00 : f32
      %22 = vector.broadcast %cst_16 : f32 to vector<8x128xf32>
      %23 = arith.select %21, %22, %19 : vector<8x128xi1>, vector<8x128xf32>
      %cst_17 = arith.constant 1.000000e+00 : f32
      %24 = vector.broadcast %cst_17 : f32 to vector<8x128xf32>
      %25 = arith.addf %24, %19 : vector<8x128xf32>
      %26 = tpu.reciprocal %25 : vector<8x128xf32> -> vector<8x128xf32>
      %27 = arith.mulf %23, %26 : vector<8x128xf32>
      %c0_18 = arith.constant 0 : index
      %c0_19 = arith.constant 0 : index
      %28 = vector.load %arg6[%c0_18, %c0_19] : memref<8x128xf32, #tpu.memory_space<vmem>>, vector<8x128xf32>
      tpu.vector_store %arg6[%c0_18, %c0_19], %27 {strides = array<i32>} : memref<8x128xf32, #tpu.memory_space<vmem>>, vector<8x128xf32>,
    } else {
    }
    return
  }
  func.func @transform_0(%arg0: i32, %arg1: i32, %arg2: i32) -> (i32, i32) {
    %c0_i32 = arith.constant 0 : i32
    return %arg0, %arg2 : i32, i32
  }
  func.func @transform_1(%arg0: i32, %arg1: i32, %arg2: i32) -> (i32, i32) {
    %c0_i32 = arith.constant 0 : i32
    return %arg2, %arg1 : i32, i32
  }
  func.func @transform_2(%arg0: i32, %arg1: i32, %arg2: i32) -> (i32, i32) {
    %c0_i32 = arith.constant 0 : i32
    %c0_i32_0 = arith.constant 0 : i32
    return %c0_i32, %arg1 : i32, i32
  }
  func.func @transform_3(%arg0: i32, %arg1: i32, %arg2: i32) -> (i32, i32) {
    %c0_i32 = arith.constant 0 : i32
    return %arg0, %arg1 : i32, i32
  }
}

</mosaic_0001>

<llo_original>
// kernel: forward.1
$region0: #{forward.1}
  #allocation0 [shape = 'u32[]', space=smem, size = 0x4, offset = 0x4, fixed_abs, tag = 'smem constant byte address 0x4 - core index']
  #allocation1 [shape = 'u32[144,128]{1,0:T(1,128)}', space=vmem, size = 0x12000, scoped, tag = 'internal scratch']
  %s0 = inlined_call_operand.hbm [shape: f32[8,32], index: 0, kind: input, shape index: {}]
  %s1 = inlined_call_operand.hbm [shape: f32[32,128], index: 1, kind: input, shape index: {}]
  %s2 = inlined_call_operand.vmem [shape: f32[1,128], index: 2, kind: input, shape index: {}]
  %s3 = inlined_call_operand.vmem [shape: f32[8,128], index: 3, kind: output, shape index: {}]
  %s4 = sld [smem:[#allocation0]]
  $region38: #{forward.1} parent=0
    _
  %s6 = ssub.s32 1, %s4
  %s7 = scalar_select 0, %s6, %s4
  $region1: #{forward.1} parent=0
    #allocation2 [shape = 'u8[4096]{0}', space=vmem, size = 0x1000, scoped, tag = 'input window, operand 0, single buffered']
    #allocation3 [shape = 's32[1]{0}', space=sflag, size = 0x4, scoped, tag = 'scoped memory for forward.1']
    #allocation4 [shape = 'u8[16384]{0}', space=vmem, size = 0x4000, scoped, tag = 'input window, operand 1, single buffered']
    #allocation5 [shape = 's32[1]{0}', space=sflag, size = 0x4, scoped, tag = 'scoped memory for forward.1']
    %8 = vsyncpa [#allocation3], 0
    %9 = vsyncpa [#allocation5], 0
    // Predicated region
    $region2: #{forward.1} parent=1 // pred_check
      _
    $region3: #{forward.1} parent=1 // pred_check_branch
      %11 = sbr.rel (0) target = $region5
    $region4: #{forward.1} parent=1 // pred_region
      %s13 = ssub.s32 128, 128
      %14 = vsyncadd [#allocation3], %s13
      %s16 = sshll.u32 [#allocation2], 4
      %s17 = int_to_ptr.vmem [resolvable:$true] %s16
      %19 = dma.hbm_to_vmem [thread:$0]  %s0, 128, %s17, [#allocation3]
    $region5: #{forward.1} parent=1 // pred_fallthru
      _
    // Predicated region
    $region6: #{forward.1} parent=1 // pred_check
      _
    $region7: #{forward.1} parent=1 // pred_check_branch
      %21 = sbr.rel (0) target = $region9
    $region8: #{forward.1} parent=1 // pred_region
      %s23 = ssub.s32 512, 512
      %24 = vsyncadd [#allocation5], %s23
      %s25 = sshll.u32 [#allocation4], 4
      %s26 = int_to_ptr.vmem [resolvable:$true] %s25
      %31 = dma.hbm_to_vmem [thread:$0]  %s1, 512, %s26, [#allocation5], 128, 128, 8
    $region9: #{forward.1} parent=1 // pred_fallthru
      _
    // Predicated region
    $region10: #{forward.1} parent=1 // pred_check
      _
    $region11: #{forward.1} parent=1 // pred_check_branch
      %33 = sbr.rel (0) target = $region13
    $region12: #{forward.1} parent=1 // pred_region
      _
    $region13: #{forward.1} parent=1 // pred_fallthru
      _
    // Predicated region
    $region14: #{forward.1} parent=1 // pred_check
      _
    $region15: #{forward.1} parent=1 // pred_check_branch
      %35 = sbr.rel (0) target = $region17
    $region16: #{forward.1} parent=1 // pred_region
      %36 = dma.done [#allocation3], 128
    $region17: #{forward.1} parent=1 // pred_fallthru
      _
    // Predicated region
    $region18: #{forward.1} parent=1 // pred_check
      _
    $region19: #{forward.1} parent=1 // pred_check_branch
      %38 = sbr.rel (0) target = $region21
    $region20: #{forward.1} parent=1 // pred_region
      %39 = dma.done [#allocation5], 512
    $region21: #{forward.1} parent=1 // pred_fallthru
      _
    %p40 = scmp.eq.s32.totalorder 0, 0
    // Predicated region
    $region22: #{forward.1} parent=1 // pred_check
      %p41 = pneg %p40
    $region23: #{forward.1} parent=1 // pred_check_branch
      %43 = sbr.rel (%p41) target = $region25
    $region24: #{forward.1} parent=1 // pred_region
      %44 = vst [vmem:[%s3] sm:$0xff] 0.0
    $region25: #{forward.1} parent=1 // pred_fallthru
      _
    %v45 = vld [vmem:[%s3] sm:$0xff]
    %v46 = vld [vmem:[#allocation2] sm:$0xff]
    %v47 = vld [vmem:[#allocation4] sm:$0xff]
    %v48 = vld [vmem:[#allocation4 + $0x8] sm:$0xff]
    %v49 = vld [vmem:[#allocation4 + $0x10] sm:$0xff]
    %v50 = vld [vmem:[#allocation4 + $0x18] sm:$0xff]
    %vm51 = vcmask 261120
    %v53 = vsel %vm51, %v46, 0
    %55 = vmatprep.subr.mxu0 0.0
    %56 = vmatpush1.msra.mxu0 0.0
    %57 = vmatprep.subr.mxu0 0.0
    %58 = vmatpush1.msra.mxu0 0.0
    %59 = vmatprep.subr.mxu0 0.0
    %60 = vmatpush1.msra.mxu0 0.0
    %61 = vmatprep.subr.mxu0 0.0
    %62 = vmatpush1.msra.mxu0 0.0
    %63 = vmatprep.subr.mxu0 0.0
    %64 = vmatpush1.msra.mxu0 0.0
    %65 = vmatprep.subr.mxu0 0.0
    %66 = vmatpush1.msra.mxu0 0.0
    %67 = vmatprep.subr.mxu0 0.0
    %68 = vmatpush1.msra.mxu0 0.0
    %69 = vmatprep.subr.mxu0 0.0
    %70 = vmatpush1.msra.mxu0 0.0
    %71 = vmatprep.subr.mxu0 0.0
    %72 = vmatpush1.msra.mxu0 0.0
    %73 = vmatprep.subr.mxu0 0.0
    %74 = vmatpush1.msra.mxu0 0.0
    %75 = vmatprep.subr.mxu0 0.0
    %76 = vmatpush1.msra.mxu0 0.0
    %77 = vmatprep.subr.mxu0 0.0
    %78 = vmatpush1.msra.mxu0 0.0
    %79 = vmatprep.subr.mxu0 0.0
    %v80 = vand.u32 %v50, 4294901760
    %81 = vmatpush1.msra.mxu0 %v80
    %82 = vmatprep.subr.mxu0 0.0
    %v83 = vand.u32 %v49, 4294901760
    %84 = vmatpush1.msra.mxu0 %v83
    %85 = vmatprep.subr.mxu0 0.0
    %v86 = vand.u32 %v48, 4294901760
    %87 = vmatpush1.msra.mxu0 %v86
    %88 = vmatprep.subr.mxu0 0.0
    %v89 = vand.u32 %v47, 4294901760
    %90 = vmatpush1.msra.mxu0 %v89
    %91 = vmatprep.subr.mxu0 0.0
    %92 = vmatpush2.msra.mxu0 0.0
    %93 = vmatprep.subr.mxu0 0.0
    %94 = vmatpush2.msra.mxu0 0.0
    %95 = vmatprep.subr.mxu0 0.0
    %96 = vmatpush2.msra.mxu0 0.0
    %97 = vmatprep.subr.mxu0 0.0
    %98 = vmatpush2.msra.mxu0 0.0
    %99 = vmatprep.subr.mxu0 0.0
    %100 = vmatpush2.msra.mxu0 0.0
    %101 = vmatprep.subr.mxu0 0.0
    %102 = vmatpush2.msra.mxu0 0.0
    %103 = vmatprep.subr.mxu0 0.0
    %104 = vmatpush2.msra.mxu0 0.0
    %105 = vmatprep.subr.mxu0 0.0
    %106 = vmatpush2.msra.mxu0 0.0
    %107 = vmatprep.subr.mxu0 0.0
    %108 = vmatpush2.msra.mxu0 0.0
    %109 = vmatprep.subr.mxu0 0.0
    %110 = vmatpush2.msra.mxu0 0.0
    %111 = vmatprep.subr.mxu0 0.0
    %112 = vmatpush2.msra.mxu0 0.0
    %113 = vmatprep.subr.mxu0 0.0
    %114 = vmatpush2.msra.mxu0 0.0
    %115 = vmatprep.subr.mxu0 0.0
    %116 = vmatpush2.msra.mxu0 0.0
    %117 = vmatprep.subr.mxu0 0.0
    %118 = vmatpush2.msra.mxu0 0.0
    %119 = vmatprep.subr.mxu0 0.0
    %120 = vmatpush2.msra.mxu0 0.0
    %121 = vmatprep.subr.mxu0 0.0
    %122 = vmatpush2.msra.mxu0 0.0
    %123 = vmatprep.mubr.f32.mxu0 0.0
    %v124 = vand.u32 %v53, 4294901760
    %v125 = vsub.f32 %v53, %v124
    %v126 = vand.u32 %v125, 4294901760
    %v127 = vsub.f32 %v125, %v126
    %v128 = vand.u32 %v127, 4294901760
    %129 = vmatmul.mubr.f32.gmra.mxu0 %v128
    %v130 = vpop.f32.mrf.mxu0
    %v131 = vadd.f32 0.0, %v130
    %v132 = vpop.f32.mrf.mxu0
    %133 = vdwg.mxu0
    %134 = vmatprep.subr.mxu0 0.0
    %135 = vmatpush1.msra.mxu0 0.0
    %136 = vmatprep.subr.mxu0 0.0
    %137 = vmatpush1.msra.mxu0 0.0
    %138 = vmatprep.subr.mxu0 0.0
    %139 = vmatpush1.msra.mxu0 0.0
    %140 = vmatprep.subr.mxu0 0.0
    %141 = vmatpush1.msra.mxu0 0.0
    %142 = vmatprep.subr.mxu0 0.0
    %143 = vmatpush1.msra.mxu0 0.0
    %144 = vmatprep.subr.mxu0 0.0
    %145 = vmatpush1.msra.mxu0 0.0
    %146 = vmatprep.subr.mxu0 0.0
    %147 = vmatpush1.msra.mxu0 0.0
    %148 = vmatprep.subr.mxu0 0.0
    %149 = vmatpush1.msra.mxu0 0.0
    %150 = vmatprep.subr.mxu0 0.0
    %151 = vmatpush1.msra.mxu0 0.0
    %152 = vmatprep.subr.mxu0 0.0
    %153 = vmatpush1.msra.mxu0 0.0
    %154 = vmatprep.subr.mxu0 0.0
    %155 = vmatpush1.msra.mxu0 0.0
    %156 = vmatprep.subr.mxu0 0.0
    %157 = vmatpush1.msra.mxu0 0.0
    %158 = vmatprep.subr.mxu0 0.0
    %v159 = vand.u32 %v50, 4294901760
    %v160 = vsub.f32 %v50, %v159
    %v161 = vand.u32 %v160, 4294901760
    %v162 = vsub.f32 %v160, %v161
    %v163 = vand.u32 %v162, 4294901760
    %164 = vmatpush1.msra.mxu0 %v163
    %165 = vmatprep.subr.mxu0 0.0
    %v166 = vand.u32 %v49, 4294901760
    %v167 = vsub.f32 %v49, %v166
    %v168 = vand.u32 %v167, 4294901760
    %v169 = vsub.f32 %v167, %v168
    %v170 = vand.u32 %v169, 4294901760
    %171 = vmatpush1.msra.mxu0 %v170
    %172 = vmatprep.subr.mxu0 0.0
    %v173 = vand.u32 %v48, 4294901760
    %v174 = vsub.f32 %v48, %v173
    %v175 = vand.u32 %v174, 4294901760
    %v176 = vsub.f32 %v174, %v175
    %v177 = vand.u32 %v176, 4294901760
    %178 = vmatpush1.msra.mxu0 %v177
    %179 = vmatprep.subr.mxu0 0.0
    %v180 = vand.u32 %v47, 4294901760
    %v181 = vsub.f32 %v47, %v180
    %v182 = vand.u32 %v181, 4294901760
    %v183 = vsub.f32 %v181, %v182
    %v184 = vand.u32 %v183, 4294901760
    %185 = vmatpush1.msra.mxu0 %v184
    %186 = vmatprep.subr.mxu0 0.0
    %187 = vmatpush2.msra.mxu0 0.0
    %188 = vmatprep.subr.mxu0 0.0
    %189 = vmatpush2.msra.mxu0 0.0
    %190 = vmatprep.subr.mxu0 0.0
    %191 = vmatpush2.msra.mxu0 0.0
    %192 = vmatprep.subr.mxu0 0.0
    %193 = vmatpush2.msra.mxu0 0.0
    %194 = vmatprep.subr.mxu0 0.0
    %195 = vmatpush2.msra.mxu0 0.0
    %196 = vmatprep.subr.mxu0 0.0
    %197 = vmatpush2.msra.mxu0 0.0
    %198 = vmatprep.subr.mxu0 0.0
    %199 = vmatpush2.msra.mxu0 0.0
    %200 = vmatprep.subr.mxu0 0.0
    %201 = vmatpush2.msra.mxu0 0.0
    %202 = vmatprep.subr.mxu0 0.0
    %203 = vmatpush2.msra.mxu0 0.0
    %204 = vmatprep.subr.mxu0 0.0
    %205 = vmatpush2.msra.mxu0 0.0
    %206 = vmatprep.subr.mxu0 0.0
    %207 = vmatpush2.msra.mxu0 0.0
    %208 = vmatprep.subr.mxu0 0.0
    %209 = vmatpush2.msra.mxu0 0.0
    %210 = vmatprep.subr.mxu0 0.0
    %211 = vmatpush2.msra.mxu0 0.0
    %212 = vmatprep.subr.mxu0 0.0
    %213 = vmatpush2.msra.mxu0 0.0
    %214 = vmatprep.subr.mxu0 0.0
    %215 = vmatpush2.msra.mxu0 0.0
    %216 = vmatprep.subr.mxu0 0.0
    %217 = vmatpush2.msra.mxu0 0.0
    %218 = vmatprep.mubr.f32.mxu0 0.0
    %v219 = vand.u32 %v53, 4294901760
    %220 = vmatmul.mubr.f32.gmra.mxu0 %v219
    %v221 = vpop.f32.mrf.mxu0
    %v222 = vadd.f32 %v131, %v221
    %v223 = vpop.f32.mrf.mxu0
    %224 = vdwg.mxu0
    %225 = vmatprep.subr.mxu0 0.0
    %226 = vmatpush1.msra.mxu0 0.0
    %227 = vmatprep.subr.mxu0 0.0
    %228 = vmatpush1.msra.mxu0 0.0
    %229 = vmatprep.subr.mxu0 0.0
    %230 = vmatpush1.msra.mxu0 0.0
    %231 = vmatprep.subr.mxu0 0.0
    %232 = vmatpush1.msra.mxu0 0.0
    %233 = vmatprep.subr.mxu0 0.0
    %234 = vmatpush1.msra.mxu0 0.0
    %235 = vmatprep.subr.mxu0 0.0
    %236 = vmatpush1.msra.mxu0 0.0
    %237 = vmatprep.subr.mxu0 0.0
    %238 = vmatpush1.msra.mxu0 0.0
    %239 = vmatprep.subr.mxu0 0.0
    %240 = vmatpush1.msra.mxu0 0.0
    %241 = vmatprep.subr.mxu0 0.0
    %242 = vmatpush1.msra.mxu0 0.0
    %243 = vmatprep.subr.mxu0 0.0
    %244 = vmatpush1.msra.mxu0 0.0
    %245 = vmatprep.subr.mxu0 0.0
    %246 = vmatpush1.msra.mxu0 0.0
    %247 = vmatprep.subr.mxu0 0.0
    %248 = vmatpush1.msra.mxu0 0.0
    %249 = vmatprep.subr.mxu0 0.0
    %v250 = vand.u32 %v50, 4294901760
    %v251 = vsub.f32 %v50, %v250
    %252 = vmatpush1.msra.mxu0 %v251
    %253 = vmatprep.subr.mxu0 0.0
    %v254 = vand.u32 %v49, 4294901760
    %v255 = vsub.f32 %v49, %v254
    %256 = vmatpush1.msra.mxu0 %v255
    %257 = vmatprep.subr.mxu0 0.0
    %v258 = vand.u32 %v48, 4294901760
    %v259 = vsub.f32 %v48, %v258
    %260 = vmatpush1.msra.mxu0 %v259
    %261 = vmatprep.subr.mxu0 0.0
    %v262 = vand.u32 %v47, 4294901760
    %v263 = vsub.f32 %v47, %v262
    %264 = vmatpush1.msra.mxu0 %v263
    %265 = vmatprep.subr.mxu0 0.0
    %266 = vmatpush2.msra.mxu0 0.0
    %267 = vmatprep.subr.mxu0 0.0
    %268 = vmatpush2.msra.mxu0 0.0
    %269 = vmatprep.subr.mxu0 0.0
    %270 = vmatpush2.msra.mxu0 0.0
    %271 = vmatprep.subr.mxu0 0.0
    %272 = vmatpush2.msra.mxu0 0.0
    %273 = vmatprep.subr.mxu0 0.0
    %274 = vmatpush2.msra.mxu0 0.0
    %275 = vmatprep.subr.mxu0 0.0
    %276 = vmatpush2.msra.mxu0 0.0
    %277 = vmatprep.subr.mxu0 0.0
    %278 = vmatpush2.msra.mxu0 0.0
    %279 = vmatprep.subr.mxu0 0.0
    %280 = vmatpush2.msra.mxu0 0.0
    %281 = vmatprep.subr.mxu0 0.0
    %282 = vmatpush2.msra.mxu0 0.0
    %283 = vmatprep.subr.mxu0 0.0
    %284 = vmatpush2.msra.mxu0 0.0
    %285 = vmatprep.subr.mxu0 0.0
    %286 = vmatpush2.msra.mxu0 0.0
    %287 = vmatprep.subr.mxu0 0.0
    %288 = vmatpush2.msra.mxu0 0.0
    %289 = vmatprep.subr.mxu0 0.0
    %290 = vmatpush2.msra.mxu0 0.0
    %291 = vmatprep.subr.mxu0 0.0
    %292 = vmatpush2.msra.mxu0 0.0
    %293 = vmatprep.subr.mxu0 0.0
    %294 = vmatpush2.msra.mxu0 0.0
    %295 = vmatprep.subr.mxu0 0.0
    %296 = vmatpush2.msra.mxu0 0.0
    %297 = vmatprep.mubr.f32.mxu0 0.0
    %v298 = vand.u32 %v53, 4294901760
    %v299 = vsub.f32 %v53, %v298
    %300 = vmatmul.mubr.f32.gmra.mxu0 %v299
    %v301 = vpop.f32.mrf.mxu0
    %v302 = vadd.f32 %v222, %v301
    %v303 = vpop.f32.mrf.mxu0
    %304 = vdwg.mxu0
    %305 = vmatprep.subr.mxu0 0.0
    %306 = vmatpush1.msra.mxu0 0.0
    %307 = vmatprep.subr.mxu0 0.0
    %308 = vmatpush1.msra.mxu0 0.0
    %309 = vmatprep.subr.mxu0 0.0
    %310 = vmatpush1.msra.mxu0 0.0
    %311 = vmatprep.subr.mxu0 0.0
    %312 = vmatpush1.msra.mxu0 0.0
    %313 = vmatprep.subr.mxu0 0.0
    %314 = vmatpush1.msra.mxu0 0.0
    %315 = vmatprep.subr.mxu0 0.0
    %316 = vmatpush1.msra.mxu0 0.0
    %317 = vmatprep.subr.mxu0 0.0
    %318 = vmatpush1.msra.mxu0 0.0
    %319 = vmatprep.subr.mxu0 0.0
    %320 = vmatpush1.msra.mxu0 0.0
    %321 = vmatprep.subr.mxu0 0.0
    %322 = vmatpush1.msra.mxu0 0.0
    %323 = vmatprep.subr.mxu0 0.0
    %324 = vmatpush1.msra.mxu0 0.0
    %325 = vmatprep.subr.mxu0 0.0
    %326 = vmatpush1.msra.mxu0 0.0
    %327 = vmatprep.subr.mxu0 0.0
    %328 = vmatpush1.msra.mxu0 0.0
    %329 = vmatprep.subr.mxu0 0.0
    %v330 = vand.u32 %v50, 4294901760
    %331 = vmatpush1.msra.mxu0 %v330
    %332 = vmatprep.subr.mxu0 0.0
    %v333 = vand.u32 %v49, 4294901760
    %334 = vmatpush1.msra.mxu0 %v333
    %335 = vmatprep.subr.mxu0 0.0
    %v336 = vand.u32 %v48, 4294901760
    %337 = vmatpush1.msra.mxu0 %v336
    %338 = vmatprep.subr.mxu0 0.0
    %v339 = vand.u32 %v47, 4294901760
    %340 = vmatpush1.msra.mxu0 %v339
    %341 = vmatprep.subr.mxu0 0.0
    %342 = vmatpush2.msra.mxu0 0.0
    %343 = vmatprep.subr.mxu0 0.0
    %344 = vmatpush2.msra.mxu0 0.0
    %345 = vmatprep.subr.mxu0 0.0
    %346 = vmatpush2.msra.mxu0 0.0
    %347 = vmatprep.subr.mxu0 0.0
    %348 = vmatpush2.msra.mxu0 0.0
    %349 = vmatprep.subr.mxu0 0.0
    %350 = vmatpush2.msra.mxu0 0.0
    %351 = vmatprep.subr.mxu0 0.0
    %352 = vmatpush2.msra.mxu0 0.0
    %353 = vmatprep.subr.mxu0 0.0
    %354 = vmatpush2.msra.mxu0 0.0
    %355 = vmatprep.subr.mxu0 0.0
    %356 = vmatpush2.msra.mxu0 0.0
    %357 = vmatprep.subr.mxu0 0.0
    %358 = vmatpush2.msra.mxu0 0.0
    %359 = vmatprep.subr.mxu0 0.0
    %360 = vmatpush2.msra.mxu0 0.0
    %361 = vmatprep.subr.mxu0 0.0
    %362 = vmatpush2.msra.mxu0 0.0
    %363 = vmatprep.subr.mxu0 0.0
    %364 = vmatpush2.msra.mxu0 0.0
    %365 = vmatprep.subr.mxu0 0.0
    %366 = vmatpush2.msra.mxu0 0.0
    %367 = vmatprep.subr.mxu0 0.0
    %368 = vmatpush2.msra.mxu0 0.0
    %369 = vmatprep.subr.mxu0 0.0
    %370 = vmatpush2.msra.mxu0 0.0
    %371 = vmatprep.subr.mxu0 0.0
    %372 = vmatpush2.msra.mxu0 0.0
    %373 = vmatprep.mubr.f32.mxu0 0.0
    %v374 = vand.u32 %v53, 4294901760
    %v375 = vsub.f32 %v53, %v374
    %v376 = vand.u32 %v375, 4294901760
    %377 = vmatmul.mubr.f32.gmra.mxu0 %v376
    %v378 = vpop.f32.mrf.mxu0
    %v379 = vadd.f32 %v302, %v378
    %v380 = vpop.f32.mrf.mxu0
    %381 = vdwg.mxu0
    %382 = vmatprep.subr.mxu0 0.0
    %383 = vmatpush1.msra.mxu0 0.0
    %384 = vmatprep.subr.mxu0 0.0
    %385 = vmatpush1.msra.mxu0 0.0
    %386 = vmatprep.subr.mxu0 0.0
    %387 = vmatpush1.msra.mxu0 0.0
    %388 = vmatprep.subr.mxu0 0.0
    %389 = vmatpush1.msra.mxu0 0.0
    %390 = vmatprep.subr.mxu0 0.0
    %391 = vmatpush1.msra.mxu0 0.0
    %392 = vmatprep.subr.mxu0 0.0
    %393 = vmatpush1.msra.mxu0 0.0
    %394 = vmatprep.subr.mxu0 0.0
    %395 = vmatpush1.msra.mxu0 0.0
    %396 = vmatprep.subr.mxu0 0.0
    %397 = vmatpush1.msra.mxu0 0.0
    %398 = vmatprep.subr.mxu0 0.0
    %399 = vmatpush1.msra.mxu0 0.0
    %400 = vmatprep.subr.mxu0 0.0
    %401 = vmatpush1.msra.mxu0 0.0
    %402 = vmatprep.subr.mxu0 0.0
    %403 = vmatpush1.msra.mxu0 0.0
    %404 = vmatprep.subr.mxu0 0.0
    %405 = vmatpush1.msra.mxu0 0.0
    %406 = vmatprep.subr.mxu0 0.0
    %v407 = vand.u32 %v50, 4294901760
    %v408 = vsub.f32 %v50, %v407
    %v409 = vand.u32 %v408, 4294901760
    %410 = vmatpush1.msra.mxu0 %v409
    %411 = vmatprep.subr.mxu0 0.0
    %v412 = vand.u32 %v49, 4294901760
    %v413 = vsub.f32 %v49, %v412
    %v414 = vand.u32 %v413, 4294901760
    %415 = vmatpush1.msra.mxu0 %v414
    %416 = vmatprep.subr.mxu0 0.0
    %v417 = vand.u32 %v48, 4294901760
    %v418 = vsub.f32 %v48, %v417
    %v419 = vand.u32 %v418, 4294901760
    %420 = vmatpush1.msra.mxu0 %v419
    %421 = vmatprep.subr.mxu0 0.0
    %v422 = vand.u32 %v47, 4294901760
    %v423 = vsub.f32 %v47, %v422
    %v424 = vand.u32 %v423, 4294901760
    %425 = vmatpush1.msra.mxu0 %v424
    %426 = vmatprep.subr.mxu0 0.0
    %427 = vmatpush2.msra.mxu0 0.0
    %428 = vmatprep.subr.mxu0 0.0
    %429 = vmatpush2.msra.mxu0 0.0
    %430 = vmatprep.subr.mxu0 0.0
    %431 = vmatpush2.msra.mxu0 0.0
    %432 = vmatprep.subr.mxu0 0.0
    %433 = vmatpush2.msra.mxu0 0.0
    %434 = vmatprep.subr.mxu0 0.0
    %435 = vmatpush2.msra.mxu0 0.0
    %436 = vmatprep.subr.mxu0 0.0
    %437 = vmatpush2.msra.mxu0 0.0
    %438 = vmatprep.subr.mxu0 0.0
    %439 = vmatpush2.msra.mxu0 0.0
    %440 = vmatprep.subr.mxu0 0.0
    %441 = vmatpush2.msra.mxu0 0.0
    %442 = vmatprep.subr.mxu0 0.0
    %443 = vmatpush2.msra.mxu0 0.0
    %444 = vmatprep.subr.mxu0 0.0
    %445 = vmatpush2.msra.mxu0 0.0
    %446 = vmatprep.subr.mxu0 0.0
    %447 = vmatpush2.msra.mxu0 0.0
    %448 = vmatprep.subr.mxu0 0.0
    %449 = vmatpush2.msra.mxu0 0.0
    %450 = vmatprep.subr.mxu0 0.0
    %451 = vmatpush2.msra.mxu0 0.0
    %452 = vmatprep.subr.mxu0 0.0
    %453 = vmatpush2.msra.mxu0 0.0
    %454 = vmatprep.subr.mxu0 0.0
    %455 = vmatpush2.msra.mxu0 0.0
    %456 = vmatprep.subr.mxu0 0.0
    %457 = vmatpush2.msra.mxu0 0.0
    %458 = vmatprep.mubr.f32.mxu0 0.0
    %v459 = vand.u32 %v53, 4294901760
    %460 = vmatmul.mubr.f32.gmra.mxu0 %v459
    %v461 = vpop.f32.mrf.mxu0
    %v462 = vadd.f32 %v379, %v461
    %v463 = vpop.f32.mrf.mxu0
    %464 = vdwg.mxu0
    %465 = vmatprep.subr.mxu0 0.0
    %466 = vmatpush1.msra.mxu0 0.0
    %467 = vmatprep.subr.mxu0 0.0
    %468 = vmatpush1.msra.mxu0 0.0
    %469 = vmatprep.subr.mxu0 0.0
    %470 = vmatpush1.msra.mxu0 0.0
    %471 = vmatprep.subr.mxu0 0.0
    %472 = vmatpush1.msra.mxu0 0.0
    %473 = vmatprep.subr.mxu0 0.0
    %474 = vmatpush1.msra.mxu0 0.0
    %475 = vmatprep.subr.mxu0 0.0
    %476 = vmatpush1.msra.mxu0 0.0
    %477 = vmatprep.subr.mxu0 0.0
    %478 = vmatpush1.msra.mxu0 0.0
    %479 = vmatprep.subr.mxu0 0.0
    %480 = vmatpush1.msra.mxu0 0.0
    %481 = vmatprep.subr.mxu0 0.0
    %482 = vmatpush1.msra.mxu0 0.0
    %483 = vmatprep.subr.mxu0 0.0
    %484 = vmatpush1.msra.mxu0 0.0
    %485 = vmatprep.subr.mxu0 0.0
    %486 = vmatpush1.msra.mxu0 0.0
    %487 = vmatprep.subr.mxu0 0.0
    %488 = vmatpush1.msra.mxu0 0.0
    %489 = vmatprep.subr.mxu0 0.0
    %v490 = vand.u32 %v50, 4294901760
    %491 = vmatpush1.msra.mxu0 %v490
    %492 = vmatprep.subr.mxu0 0.0
    %v493 = vand.u32 %v49, 4294901760
    %494 = vmatpush1.msra.mxu0 %v493
    %495 = vmatprep.subr.mxu0 0.0
    %v496 = vand.u32 %v48, 4294901760
    %497 = vmatpush1.msra.mxu0 %v496
    %498 = vmatprep.subr.mxu0 0.0
    %v499 = vand.u32 %v47, 4294901760
    %500 = vmatpush1.msra.mxu0 %v499
    %501 = vmatprep.subr.mxu0 0.0
    %502 = vmatpush2.msra.mxu0 0.0
    %503 = vmatprep.subr.mxu0 0.0
    %504 = vmatpush2.msra.mxu0 0.0
    %505 = vmatprep.subr.mxu0 0.0
    %506 = vmatpush2.msra.mxu0 0.0
    %507 = vmatprep.subr.mxu0 0.0
    %508 = vmatpush2.msra.mxu0 0.0
    %509 = vmatprep.subr.mxu0 0.0
    %510 = vmatpush2.msra.mxu0 0.0
    %511 = vmatprep.subr.mxu0 0.0
    %512 = vmatpush2.msra.mxu0 0.0
    %513 = vmatprep.subr.mxu0 0.0
    %514 = vmatpush2.msra.mxu0 0.0
    %515 = vmatprep.subr.mxu0 0.0
    %516 = vmatpush2.msra.mxu0 0.0
    %517 = vmatprep.subr.mxu0 0.0
    %518 = vmatpush2.msra.mxu0 0.0
    %519 = vmatprep.subr.mxu0 0.0
    %520 = vmatpush2.msra.mxu0 0.0
    %521 = vmatprep.subr.mxu0 0.0
    %522 = vmatpush2.msra.mxu0 0.0
    %523 = vmatprep.subr.mxu0 0.0
    %524 = vmatpush2.msra.mxu0 0.0
    %525 = vmatprep.subr.mxu0 0.0
    %526 = vmatpush2.msra.mxu0 0.0
    %527 = vmatprep.subr.mxu0 0.0
    %528 = vmatpush2.msra.mxu0 0.0
    %529 = vmatprep.subr.mxu0 0.0
    %530 = vmatpush2.msra.mxu0 0.0
    %531 = vmatprep.subr.mxu0 0.0
    %532 = vmatpush2.msra.mxu0 0.0
    %533 = vmatprep.mubr.f32.mxu0 0.0
    %v534 = vand.u32 %v53, 4294901760
    %535 = vmatmul.mubr.f32.gmra.mxu0 %v534
    %v536 = vpop.f32.mrf.mxu0
    %v537 = vadd.f32 %v462, %v536
    %v538 = vpop.f32.mrf.mxu0
    %539 = vdwg.mxu0
    %v540 = vadd.f32 %v45, %v537
    %541 = vst [vmem:[%s3] sm:$0xff] %v540
    // Predicated region
    $region26: #{forward.1} parent=1 // pred_check
      %p542 = pneg %p40
    $region27: #{forward.1} parent=1 // pred_check_branch
      %544 = sbr.rel (%p542) target = $region29
    $region28: #{forward.1} parent=1 // pred_region
      %v545 = vld [vmem:[%s3] sm:$0xff]
      %v546 = vld [vmem:[%s2] sm:$0x1]
      %v548 = vlaneseq
      %v549 = vshrl.u32 %v548, 7
      %v550 = vsub.s32 0, %v549
      %v551 = vrot.slane %v546, %v550
      %v553 = vadd.f32 %v545, %v551
      %v554 = vand.u32 2147483647, %v553
      %v555 = vsub.f32 0.0, %v554
      %v556 = vmul.f32 %v555, 1.442695
      %v557 = vpow.pop %v556
      %vm558 = vcmp.ge.f32.partialorder %v553, 0.0
      %v559 = vsel %vm558, 1.0, %v557
      %v560 = vadd.f32 %v557, 1.0
      %v561 = vrcp.pop %v560
      %v562 = vmul.f32 %v559, %v561
      %563 = vst [vmem:[%s3] sm:$0xff] %v562
    $region29: #{forward.1} parent=1 // pred_fallthru
      _
    // Predicated region
    $region30: #{forward.1} parent=1 // pred_check
      _
    $region31: #{forward.1} parent=1 // pred_check_branch
      %565 = sbr.rel (0) target = $region33
    $region32: #{forward.1} parent=1 // pred_region
      _
    $region33: #{forward.1} parent=1 // pred_fallthru
      _
    // Predicated region
    $region34: #{forward.1} parent=1 // pred_check
      _
    $region35: #{forward.1} parent=1 // pred_check_branch
      %567 = sbr.rel (0) target = $region37
    $region36: #{forward.1} parent=1 // pred_region
      _
    $region37: #{forward.1} parent=1 // pred_fallthru
      _
    %568 = vsyncpa [#allocation3], 1
    %569 = vsyncpa [#allocation5], 1

</llo_original>
